<compile_context>
chip_gen: v6e
topology: v6e:2x2x1
jax: 0.10.0
libtpu: 0.0.40
codegen_flags: <defaults>
</compile_context>

<pallas_src>
import functools

import jax
import jax.numpy as jnp
from jax.experimental import pallas as pl
from jax.experimental.pallas import tpu as pltpu

_LANES = 128
# Per-DMA chunk budget (bytes).  HBM->HBM DMAs use no scoped VMEM, so this only
# controls grid-step count: big enough to amortize per-step overhead, small
# enough that multi-MiB tables split across >=2 steps (feeds both v7x TCs).
_DEFAULT_TILE_BYTES = 8 * 1024 * 1024
_SPLIT_THRESHOLD_BYTES = 2 * 1024 * 1024


def _sublanes_for(dtype) -> int:
    # dtype-aware sublane multiple: 8 (f32), 16 (bf16), 32 (int8/fp8).
    return max(1, (8 * 4) // jnp.dtype(dtype).itemsize)


def _uniform_dma_kernel(tile_rows, src_ref, dst_ref, sem):
    # One HBM->HBM DMA per grid step; rows divide evenly into chunks.
    r0 = pl.program_id(0) * tile_rows
    cp = pltpu.make_async_copy(
        src_ref.at[pl.ds(r0, tile_rows), :],
        dst_ref.at[pl.ds(r0, tile_rows), :],
        sem,
    )
    cp.start()
    cp.wait()


def _ragged_dma_kernel(tile_rows, rem_rows, n_tiles, src_ref, dst_ref, sem):
    # Same as above, but the last grid step copies the (smaller) remainder.
    i = pl.program_id(0)
    r0 = i * tile_rows

    @pl.when(i < n_tiles - 1)
    def _full():
        cp = pltpu.make_async_copy(
            src_ref.at[pl.ds(r0, tile_rows), :],
            dst_ref.at[pl.ds(r0, tile_rows), :],
            sem,
        )
        cp.start()
        cp.wait()

    @pl.when(i == n_tiles - 1)
    def _tail():
        cp = pltpu.make_async_copy(
            src_ref.at[pl.ds(r0, rem_rows), :],
            dst_ref.at[pl.ds(r0, rem_rows), :],
            sem,
        )
        cp.start()
        cp.wait()


def _pallas_dma_copy_2d(x: jax.Array, *, max_tile_bytes: int = _DEFAULT_TILE_BYTES) -> jax.Array:
    """Row-chunked HBM->HBM DMA copy of a 2-D array (no VMEM staging)."""
    rows, cols = x.shape
    itemsize = jnp.dtype(x.dtype).itemsize
    row_bytes = max(1, cols * itemsize)
    total_bytes = rows * row_bytes
    sub = _sublanes_for(x.dtype)

    # Chunk count: honor the byte budget and split >=2 ways once the table is
    # big enough that feeding both v7x TensorCores matters.
    n_target = max(1, pl.cdiv(total_bytes, max_tile_bytes))
    if total_bytes >= _SPLIT_THRESHOLD_BYTES:
        n_target = max(n_target, 2)
    tile_rows = pl.cdiv(rows, n_target)
    if tile_rows > sub:
        tile_rows = pl.cdiv(tile_rows, sub) * sub  # sublane-aligned chunk starts
    tile_rows = min(tile_rows, rows)
    n_tiles = pl.cdiv(rows, tile_rows)
    rem_rows = rows - (n_tiles - 1) * tile_rows

    if rem_rows == tile_rows:
        kernel = functools.partial(_uniform_dma_kernel, tile_rows)
    else:
        kernel = functools.partial(_ragged_dma_kernel, tile_rows, rem_rows, n_tiles)

    return pl.pallas_call(
        kernel,
        out_shape=jax.ShapeDtypeStruct((rows, cols), x.dtype),
        grid_spec=pltpu.PrefetchScalarGridSpec(
            num_scalar_prefetch=0,
            grid=(n_tiles,),
            # pl.ANY: leave both operands in HBM; the kernel DMAs directly.
            in_specs=[pl.BlockSpec(memory_space=pl.ANY)],
            out_specs=pl.BlockSpec(memory_space=pl.ANY),
            scratch_shapes=[pltpu.SemaphoreType.DMA],
        ),
        compiler_params=pltpu.CompilerParams(
            # Disjoint row chunks -> grid steps can shard across v7x's 2 TCs.
            dimension_semantics=("parallel",),
        ),
        cost_estimate=pl.CostEstimate(
            flops=0,
            transcendentals=0,
            bytes_accessed=2 * rows * cols * itemsize,
        ),
    )(x)


def materialize_embedding(z_table: jax.Array, *, max_tile_bytes: int = _DEFAULT_TILE_BYTES) -> jax.Array:
    """Materialize the (num, dim) embedding table via the Pallas DMA kernel."""
    num, dim = z_table.shape
    total = num * dim
    if total % _LANES == 0:
        # Lane-dense view (last axis = 128): the reshape is layout plumbing only.
        flat = z_table.reshape(total // _LANES, _LANES)
        out = _pallas_dma_copy_2d(flat, max_tile_bytes=max_tile_bytes)
        return out.reshape(num, dim)
    # Non-lane-aligned tables: the DMA path row-tiles the raw (num, dim) table
    # directly — no VMEM blocks, so any table size is safe.
    return _pallas_dma_copy_2d(z_table, max_tile_bytes=max_tile_bytes)


class SuperEmbedding:
    """JAX mirror of Super_Embedding(Embedding)."""

    def __init__(self, num: int, dim: int, key: jax.Array):
        self.num = num
        self.dim = dim
        # Single contiguous (num, dim) parameter table instead of `num`
        # separate (dim,) buffers: removes all stack/concatenate glue traffic.
        self.z = jax.random.normal(key, (num, dim), dtype=jnp.float32)

    def materialize(self) -> jax.Array:
        return materialize_embedding(self.z)

    def forward(self):
        # Matches the PyTorch module: forward() is `pass` -> returns None.
        return None


if __name__ == "__main__":
    key = jax.random.PRNGKey(0)

    # Small shapes consistent with Embedding(num, dim).
    num, dim = 8, 32
    module = SuperEmbedding(num=num, dim=dim, key=key)

    # forward() semantics (returns None), plus the Pallas-materialized table.
    assert module.forward() is None
    table = jax.block_until_ready(module.materialize())
    assert table.shape == (num, dim)
    assert bool(jnp.array_equal(table, module.z))

    # Exercise the multi-step (uniform) lane-dense path and the ragged
    # non-128-multiple path with a tiny chunk budget to force grid > 1.
    k1, k2 = jax.random.split(key)
    a = jax.random.normal(k1, (64, 32), dtype=jnp.float32)      # total % 128 == 0
    out_a = jax.block_until_ready(materialize_embedding(a, max_tile_bytes=4096))
    assert bool(jnp.array_equal(out_a, a))

    b = jax.random.normal(k2, (33, 48), dtype=jnp.float32)      # total % 128 != 0
    out_b = jax.block_until_ready(materialize_embedding(b, max_tile_bytes=1024))
    assert bool(jnp.array_equal(out_b, b))

    print("KERNEL_OK")
</pallas_src>

<mosaic_0001>
module attributes {stable_mosaic.version = 11 : i64} {
  func.func @_uniform_dma_kernel(%arg0: i32, %arg1: memref<2x128xf32, #tpu.memory_space<any>>, %arg2: memref<2x128xf32, #tpu.memory_space<any>>, %arg3: memref<!tpu.dma_semaphore, #tpu.memory_space<semaphore_mem>>) attributes {dimension_semantics = [#tpu.dimension_semantics<parallel>], iteration_bounds = array<i64: 1>, scalar_prefetch = 0 : i64, scratch_operands = 1 : i64, tpu.core_type = #tpu.core_type<tc>, window_params = [{}, {}]} {
    %c2_i32 = arith.constant 2 : i32
    %0 = arith.muli %arg0, %c2_i32 : i32
    %c0_i32 = arith.constant 0 : i32
    %1 = tpu.memref_slice %arg1[%0, %c0_i32] : memref<2x128xf32, #tpu.memory_space<any>> -> memref<2x128xf32, #tpu.memory_space<any>>
    %c0_i32_0 = arith.constant 0 : i32
    %2 = tpu.memref_slice %arg2[%0, %c0_i32_0] : memref<2x128xf32, #tpu.memory_space<any>> -> memref<2x128xf32, #tpu.memory_space<any>>
    tpu.enqueue_dma source(%1 : memref<2x128xf32, #tpu.memory_space<any>>) target(%2 : memref<2x128xf32, #tpu.memory_space<any>>) target_semaphore(%arg3 : memref<!tpu.dma_semaphore, #tpu.memory_space<semaphore_mem>>)
    %c0_i32_1 = arith.constant 0 : i32
    %3 = tpu.memref_slice %arg1[%0, %c0_i32_1] : memref<2x128xf32, #tpu.memory_space<any>> -> memref<2x128xf32, #tpu.memory_space<any>>
    %c0_i32_2 = arith.constant 0 : i32
    %4 = tpu.memref_slice %arg2[%0, %c0_i32_2] : memref<2x128xf32, #tpu.memory_space<any>> -> memref<2x128xf32, #tpu.memory_space<any>>
    tpu.wait_dma2 semaphore(%arg3 : memref<!tpu.dma_semaphore, #tpu.memory_space<semaphore_mem>>) src(%3 : memref<2x128xf32, #tpu.memory_space<any>>) dst(%4 : memref<2x128xf32, #tpu.memory_space<any>>)
    return
  }
}

</mosaic_0001>

<llo_original>
// kernel: tpu_custom_call.1
$region0: #{tpu_custom_call.1}
  #allocation0 [shape = 'u32[]', space=smem, size = 0x4, offset = 0x4, fixed_abs, tag = 'smem constant byte address 0x4 - core index']
  #allocation1 [shape = 'u32[144,128]{1,0:T(1,128)}', space=vmem, size = 0x12000, scoped, tag = 'internal scratch']
  #allocation2 [shape = 's32[1]{0}', space=sflag, size = 0x4, scoped, tag = 'scratch operand']
  #allocation3 [shape = 's32[]', space=sflag, size = 0x4, offset = 0, fixed_abs, tag = 'sflag constant byte address 0x0 - dummy sync flag']
  #allocation4 [shape = 'u32[0]{0}', space=smem, size = 0, offset = 0, fixed_abs, tag = 'smem constant byte address 0x0 - null']
  %s0 = inlined_call_operand.hbm [shape: f32[2,128], index: 0, kind: input, shape index: {}]
  %s1 = inlined_call_operand.hbm [shape: f32[2,128], index: 1, kind: output, shape index: {}]
  %s2 = sld [smem:[#allocation0]]
  $region2: #{tpu_custom_call.1} parent=0
    _
  %s4 = ssub.s32 1, %s2
  %s5 = scalar_select 0, %s4, %s2
  %s6 = smul.u32 0, 2
  %s7 = smul.addr %s6, 16
  %s8 = scalar_lea.hbm %s0, %s7
  %s9 = smul.addr %s6, 16
  %s10 = scalar_lea.hbm %s1, %s9
  %s12 = sshll.u32 1, 14
  %s13 = sxor.u32 4294967295, %s12
  %17 = dma.general %s8, 32, %s10, [#allocation2], 131072, [#allocation4], 0, 0
  %s18 = smul.u32 2, 1
  %s19 = sshll.u32 %s18, 4
  %20 = dma.done [#allocation2], %s19
  %21 = vsyncmov [#allocation2]
  %s22 = vpop.sfrf %21
  %p23 = scmp.eq.s32.totalorder %s22, 0
  %p24 = pneg %p23
  %26 = shalt.err (%p24)

</llo_original>
